<compile_context>
chip_gen: v7x
topology: tpu7x:2x2x1
jax: 0.10.0
libtpu: 0.0.40
codegen_flags: <defaults>
</compile_context>

<pallas_src>
import math
from functools import partial

import jax
import jax.numpy as jnp
from jax import lax
from jax.experimental import pallas as pl
from jax.experimental.pallas import tpu as pltpu


def _clip_loss_kernel(
    scale_ref,      # SMEM (1,)      logit_scale
    img_ref,        # VMEM (T, D)    image-feature row tile (rows of logits)
    txt_ref,        # VMEM (T, D)    text-feature tile (columns of logits)
    loss_ref,       # VMEM (1, 1)    output: loss
    acc_ref,        # VMEM (1, 1)    output: accuracy (%)
    inv_row_ref,    # VMEM (T, 1)    cached exp(scale)/||img_row|| for current row tile
    m_row_ref,      # VMEM (T, 1)    running row max (current row tile)
    l_row_ref,      # VMEM (T, 1)    running row sum-exp (current row tile)
    diag_ref,       # VMEM (T, 1)    diagonal (target) logits of current row tile
    inv_col_ref,    # VMEM (n,1,T)   cached 1/||txt_row|| per column tile
    m_col_ref,      # VMEM (n,1,T)   running column max, per column tile
    l_col_ref,      # VMEM (n,1,T)   running column sum-exp, per column tile
    loss_acc_ref,   # VMEM (1, 1)    scalar loss-sum accumulator
    acc_acc_ref,    # VMEM (1, 1)    scalar correct-count accumulator
    *,
    batch: int,
    mm_dtype,
    single_exp: bool,
):
    i = pl.program_id(0)       # row-tile index (outer)
    j = pl.program_id(1)       # col-tile index (inner)
    ni = pl.num_programs(0)
    nj = pl.num_programs(1)
    T, D = img_ref.shape
    f32 = jnp.float32

    # ---------------- global init ----------------
    @pl.when(jnp.logical_and(i == 0, j == 0))
    def _():
        loss_acc_ref[...] = jnp.zeros_like(loss_acc_ref)
        acc_acc_ref[...] = jnp.zeros_like(acc_acc_ref)

    # ---- per row tile: reset row state + cache row factor (once per row tile) ----
    @pl.when(j == 0)
    def _():
        m_row_ref[...] = jnp.full_like(m_row_ref, -jnp.inf)
        l_row_ref[...] = jnp.zeros_like(l_row_ref)
        diag_ref[...] = jnp.zeros_like(diag_ref)
        scale = jnp.exp(scale_ref[0].astype(f32))
        x = img_ref[...].astype(f32)
        ssq = jnp.sum(x * x, axis=-1, keepdims=True)                 # (T, 1)
        # rsqrt(max(sumsq, 1e-24)) == 1 / max(||x||, 1e-12) (F.normalize semantics)
        inv_row_ref[...] = lax.rsqrt(jnp.maximum(ssq, f32(1e-24))) * scale

    # ---- per column tile: reset col state + cache col factor (once per col tile) ----
    @pl.when(i == 0)
    def _():
        m_col_ref[j] = jnp.full((1, T), -jnp.inf, dtype=f32)
        l_col_ref[j] = jnp.zeros((1, T), dtype=f32)
        y = txt_ref[...].astype(f32)
        # (1, T)-oriented sum of squares straight off the MXU: ones(1,D) · (y*y)^T
        ssq = lax.dot_general(jnp.ones((1, D), f32), y * y,
                              dimension_numbers=(((1,), (1,)), ((), ())),
                              preferred_element_type=f32)            # (1, T)
        inv_col_ref[j] = lax.rsqrt(jnp.maximum(ssq, f32(1e-24)))

    # ---- one MXU matmul on the RAW tiles; normalization folded into the result ----
    a = img_ref[...]
    b = txt_ref[...]
    if a.dtype != mm_dtype:
        a = a.astype(mm_dtype)
    if b.dtype != mm_dtype:
        b = b.astype(mm_dtype)
    logits = lax.dot_general(a, b,
                             dimension_numbers=(((1,), (1,)), ((), ())),
                             preferred_element_type=f32)              # (T, T) f32
    logits = logits * inv_row_ref[...] * inv_col_ref[j]

    # ---- running maxima in both directions (XLU) ----
    t_rmax = jnp.max(logits, axis=-1, keepdims=True)                  # (T, 1)
    t_cmax = jnp.max(logits, axis=0, keepdims=True)                   # (1, T)
    m_row_old = m_row_ref[...]
    m_col_old = m_col_ref[j]
    m_row_new = jnp.maximum(m_row_old, t_rmax)
    m_col_new = jnp.maximum(m_col_old, t_cmax)

    ones_r = jnp.ones((T, 1), f32)
    ones_c = jnp.ones((1, T), f32)
    if single_exp:
        # one shared (T,T) exp; row/col sums via MXU matvecs; rescale per direction
        m_tile = jnp.max(t_cmax, axis=-1, keepdims=True)              # (1, 1)
        p = jnp.exp(logits - m_tile)
        rowsum = lax.dot_general(p, ones_r, (((1,), (0,)), ((), ())),
                                 preferred_element_type=f32)          # (T, 1)
        colsum = lax.dot_general(ones_c, p, (((1,), (0,)), ((), ())),
                                 preferred_element_type=f32)          # (1, T)
        rowsum = rowsum * jnp.exp(m_tile - m_row_new)
        colsum = colsum * jnp.exp(m_tile - m_col_new)
    else:
        # two-shift path (safe for extreme within-tile logit spreads)
        p_r = jnp.exp(logits - m_row_new)
        p_c = jnp.exp(logits - m_col_new)
        rowsum = lax.dot_general(p_r, ones_r, (((1,), (0,)), ((), ())),
                                 preferred_element_type=f32)          # (T, 1)
        colsum = lax.dot_general(ones_c, p_c, (((1,), (0,)), ((), ())),
                                 preferred_element_type=f32)          # (1, T)

    l_row_ref[...] = l_row_ref[...] * jnp.exp(m_row_old - m_row_new) + rowsum
    l_col_ref[j] = l_col_ref[j] * jnp.exp(m_col_old - m_col_new) + colsum
    m_row_ref[...] = m_row_new
    m_col_ref[j] = m_col_new

    # ---- diagonal tile: extract target logits (labels == arange(B)) ----
    @pl.when(i == j)
    def _():
        rr = lax.broadcasted_iota(jnp.int32, (T, T), 0)
        cc = lax.broadcasted_iota(jnp.int32, (T, T), 1)
        diag_ref[...] = jnp.sum(jnp.where(rr == cc, logits, 0.0),
                                axis=-1, keepdims=True)

    # ---- finalize current row tile (end of a column sweep) ----
    @pl.when(j == nj - 1)
    def _():
        lse_row = m_row_ref[...] + jnp.log(l_row_ref[...])            # (T, 1)
        # contributes sum(lse_row) - 2*sum(diag)  (diag appears in both CE terms)
        loss_acc_ref[...] += jnp.sum(lse_row - 2.0 * diag_ref[...], keepdims=True)
        # argmax(row) == row  <=>  diag is the row max (ties ignored, measure-zero)
        acc_acc_ref[...] += jnp.sum(
            (diag_ref[...] >= m_row_ref[...]).astype(f32), keepdims=True)

    # ---- finalize column tile j once the last row tile contributed ----
    @pl.when(i == ni - 1)
    def _():
        lse_col = m_col_ref[j] + jnp.log(l_col_ref[j])                # (1, T)
        loss_acc_ref[...] += jnp.sum(lse_col, keepdims=True)

    # ---- final scalar outputs ----
    @pl.when(jnp.logical_and(i == ni - 1, j == nj - 1))
    def _():
        loss_ref[...] = loss_acc_ref[...] * (0.5 / batch)
        acc_ref[...] = acc_acc_ref[...] * (100.0 / batch)


def _pick_block(b: int, d: int, itemsize: int, vmem_budget: int = 24 << 20) -> int:
    """Largest tile (512/256/128) dividing b whose working set fits the default
    scoped-VMEM budget on every chip generation (v7x is the tightest: 64 MiB
    physical, 32 MiB default scoped)."""
    for t in (512, 256, 128):
        if b % t:
            continue
        n = b // t
        est = (4 * t * d * itemsize          # img + txt tiles, double-buffered
               + 4 * t * t * 4               # logits / exp / diag-mask temporaries
               + 3 * n * 8 * t * 4           # m_col, l_col, inv_col (sublane-padded)
               + 8 * t * 4)                  # small per-row-tile state
        if est <= vmem_budget:
            return t
    # small / ragged batches fall back to a single full-batch tile
    return b


def clip_loss(img, txt, logit_scale, *, block_b=None, mm_dtype=None,
              single_exp=True, vmem_limit_bytes=None):
    """Single-device CLIPLoss forward. img, txt: (B, D); logit_scale: (1,) or ().

    Returns (loss, acc) f32 scalars.
      mm_dtype: MXU operand dtype. Default: bf16 for bf16 inputs, f32 for f32
                inputs (preserves the reference module's precision). Pass
                jnp.bfloat16 to force near-peak MXU throughput on f32 features.
      single_exp: one shared exp per (T,T) tile (halves EUP work). Set False if
                  within-tile logit spread can exceed ~88 (logit_scale at clamp
                  with extreme similarity range).
    """
    b, d = img.shape
    assert txt.shape == (b, d)
    logit_scale = jnp.reshape(logit_scale, (1,))

    t = block_b if block_b is not None else _pick_block(b, d, img.dtype.itemsize)
    assert b % t == 0, "batch must be divisible by the block size"
    n = b // t

    if mm_dtype is None:
        mm_dtype = jnp.bfloat16 if img.dtype == jnp.bfloat16 else jnp.float32

    kernel = partial(_clip_loss_kernel, batch=b, mm_dtype=mm_dtype,
                     single_exp=single_exp)

    grid_spec = pltpu.PrefetchScalarGridSpec(
        num_scalar_prefetch=0,
        grid=(n, n),                     # (row tiles, column tiles) — cols innermost
        in_specs=[
            pl.BlockSpec(memory_space=pltpu.MemorySpace.SMEM),        # logit_scale
            pl.BlockSpec((t, d), lambda i, j: (i, 0)),                # img row tile
            pl.BlockSpec((t, d), lambda i, j: (j, 0)),                # txt col tile
        ],
        out_specs=[
            pl.BlockSpec((1, 1), lambda i, j: (0, 0)),                # loss
            pl.BlockSpec((1, 1), lambda i, j: (0, 0)),                # acc
        ],
        scratch_shapes=[
            pltpu.VMEM((t, 1), jnp.float32),      # inv_row (cached row factor)
            pltpu.VMEM((t, 1), jnp.float32),      # m_row
            pltpu.VMEM((t, 1), jnp.float32),      # l_row
            pltpu.VMEM((t, 1), jnp.float32),      # diag
            pltpu.VMEM((n, 1, t), jnp.float32),   # inv_col (cached col factor)
            pltpu.VMEM((n, 1, t), jnp.float32),   # m_col (per column tile)
            pltpu.VMEM((n, 1, t), jnp.float32),   # l_col (per column tile)
            pltpu.VMEM((1, 1), jnp.float32),      # loss accumulator
            pltpu.VMEM((1, 1), jnp.float32),      # correct-count accumulator
        ],
    )

    # Both grid axes carry cross-step accumulator state (row-LSE over j,
    # column-LSE over i), so neither may be parallelized across cores.
    cp_kwargs = dict(dimension_semantics=("arbitrary", "arbitrary"))
    if vmem_limit_bytes is not None:
        cp_kwargs["vmem_limit_bytes"] = int(vmem_limit_bytes)

    loss, acc = pl.pallas_call(
        kernel,
        out_shape=(
            jax.ShapeDtypeStruct((1, 1), jnp.float32),
            jax.ShapeDtypeStruct((1, 1), jnp.float32),
        ),
        grid_spec=grid_spec,
        compiler_params=pltpu.CompilerParams(**cp_kwargs),
    )(logit_scale, img, txt)
    return loss[0, 0], acc[0, 0]


def _reference(img, txt, logit_scale):
    # pure-JAX reference matching the PyTorch module (single device).
    def norm(x):
        nrm = jnp.sqrt(jnp.sum(x * x, axis=-1, keepdims=True))
        return x / jnp.maximum(nrm, 1e-12)
    img_n, txt_n = norm(img.astype(jnp.float32)), norm(txt.astype(jnp.float32))
    s = jnp.exp(logit_scale.reshape(())[None][0])
    li = s * (img_n @ txt_n.T)
    lt = s * (txt_n @ img_n.T)
    labels = jnp.arange(img.shape[0])

    def ce(l):
        return jnp.mean(jax.scipy.special.logsumexp(l, axis=-1) - l[labels, labels])

    loss = 0.5 * (ce(li) + ce(lt))
    acc = jnp.mean((jnp.argmax(li, axis=-1) == labels).astype(jnp.float32)) * 100.0
    return loss, acc


if __name__ == "__main__":
    key = jax.random.PRNGKey(0)
    k1, k2, k3, k4 = jax.random.split(key, 4)
    # CLIP's canonical init: logit_scale = log(1/0.07)
    logit_scale = jnp.array([math.log(1.0 / 0.07)], dtype=jnp.float32)

    # --- tiny shape (single-tile grid), default single-exp path ---
    img = jax.random.normal(k1, (8, 32), dtype=jnp.float32)
    txt = jax.random.normal(k2, (8, 32), dtype=jnp.float32)
    loss, acc = jax.block_until_ready(clip_loss(img, txt, logit_scale))
    ref_loss, ref_acc = _reference(img, txt, logit_scale)
    assert jnp.allclose(loss, ref_loss, atol=1e-3, rtol=1e-3), (loss, ref_loss)
    assert jnp.allclose(acc, ref_acc, atol=1e-3, rtol=1e-3), (acc, ref_acc)

    # --- tiny shape, two-shift (safe-softmax) path ---
    loss_s, acc_s = jax.block_until_ready(
        clip_loss(img, txt, logit_scale, single_exp=False))
    assert jnp.allclose(loss_s, ref_loss, atol=1e-3, rtol=1e-3), (loss_s, ref_loss)
    assert jnp.allclose(acc_s, ref_acc, atol=1e-3, rtol=1e-3), (acc_s, ref_acc)

    # --- multi-tile shape (2x2 grid of 128-row tiles) exercising the online LSE ---
    img2 = jax.random.normal(k3, (256, 64), dtype=jnp.float32)
    txt2 = jax.random.normal(k4, (256, 64), dtype=jnp.float32)
    loss2, acc2 = jax.block_until_ready(clip_loss(img2, txt2, logit_scale, block_b=128))
    ref_loss2, ref_acc2 = _reference(img2, txt2, logit_scale)
    assert jnp.allclose(loss2, ref_loss2, atol=2e-3, rtol=2e-3), (loss2, ref_loss2)
    assert jnp.allclose(acc2, ref_acc2, atol=1e-3, rtol=1e-3), (acc2, ref_acc2)

    # --- bf16 features: raw bf16 tiles on the MXU (f32 accumulation) ---
    img3 = img2.astype(jnp.bfloat16)
    txt3 = txt2.astype(jnp.bfloat16)
    loss3, acc3 = jax.block_until_ready(clip_loss(img3, txt3, logit_scale, block_b=128))
    ref_loss3, ref_acc3 = _reference(img3, txt3, logit_scale)
    assert jnp.isfinite(loss3) and jnp.isfinite(acc3)
    assert jnp.allclose(loss3, ref_loss3, atol=1e-2, rtol=1e-2), (loss3, ref_loss3)
    assert jnp.allclose(acc3, ref_acc3, atol=0.5), (acc3, ref_acc3)

    print("KERNEL_OK")
</pallas_src>

<mosaic_0001>
module attributes {stable_mosaic.version = 11 : i64} {
  func.func @_clip_loss_kernel(%arg0: i32, %arg1: i32, %arg2: memref<1xf32, #tpu.memory_space<smem>>, %arg3: memref<8x32xf32, #tpu.memory_space<vmem>>, %arg4: memref<8x32xf32, #tpu.memory_space<vmem>>, %arg5: memref<1x1xf32, #tpu.memory_space<vmem>>, %arg6: memref<1x1xf32, #tpu.memory_space<vmem>>, %arg7: memref<8x1xf32, #tpu.memory_space<vmem>>, %arg8: memref<8x1xf32, #tpu.memory_space<vmem>>, %arg9: memref<8x1xf32, #tpu.memory_space<vmem>>, %arg10: memref<8x1xf32, #tpu.memory_space<vmem>>, %arg11: memref<1x1x8xf32, #tpu.memory_space<vmem>>, %arg12: memref<1x1x8xf32, #tpu.memory_space<vmem>>, %arg13: memref<1x1x8xf32, #tpu.memory_space<vmem>>, %arg14: memref<1x1xf32, #tpu.memory_space<vmem>>, %arg15: memref<1x1xf32, #tpu.memory_space<vmem>>) attributes {dimension_semantics = [#tpu.dimension_semantics<arbitrary>, #tpu.dimension_semantics<arbitrary>], iteration_bounds = array<i64: 1, 1>, scalar_prefetch = 0 : i64, scratch_operands = 9 : i64, tpu.core_type = #tpu.core_type<tc>, window_params = [{transform_indices = @transform_0, window_bounds = array<i64: 1>}, {transform_indices = @transform_1, window_bounds = array<i64: 8, 32>}, {transform_indices = @transform_2, window_bounds = array<i64: 8, 32>}, {pipeline_mode = #tpu.pipeline_mode<synchronous>, transform_indices = @transform_3, window_bounds = array<i64: 1, 1>}, {pipeline_mode = #tpu.pipeline_mode<synchronous>, transform_indices = @transform_4, window_bounds = array<i64: 1, 1>}]} {
    %c0_i32 = arith.constant 0 : i32
    %0 = arith.cmpi eq, %arg0, %c0_i32 : i32
    %c0_i32_0 = arith.constant 0 : i32
    %1 = arith.cmpi eq, %arg1, %c0_i32_0 : i32
    %2 = arith.andi %0, %1 : i1
    %3 = arith.extui %2 : i1 to i32
    %c0_i32_1 = arith.constant 0 : i32
    %4 = arith.cmpi ne, %3, %c0_i32_1 : i32
    scf.if %4 {
      %cst_44 = arith.constant 0.000000e+00 : f32
      %85 = vector.broadcast %cst_44 : f32 to vector<1x1xf32>
      %c0_45 = arith.constant 0 : index
      %c0_46 = arith.constant 0 : index
      %86 = vector.load %arg14[%c0_45, %c0_46] : memref<1x1xf32, #tpu.memory_space<vmem>>, vector<1x1xf32>
      tpu.vector_store %arg14[%c0_45, %c0_46], %85 {strides = array<i32>} : memref<1x1xf32, #tpu.memory_space<vmem>>, vector<1x1xf32>,
      %cst_47 = arith.constant 0.000000e+00 : f32
      %87 = vector.broadcast %cst_47 : f32 to vector<1x1xf32>
      %c0_48 = arith.constant 0 : index
      %c0_49 = arith.constant 0 : index
      %88 = vector.load %arg15[%c0_48, %c0_49] : memref<1x1xf32, #tpu.memory_space<vmem>>, vector<1x1xf32>
      tpu.vector_store %arg15[%c0_48, %c0_49], %87 {strides = array<i32>} : memref<1x1xf32, #tpu.memory_space<vmem>>, vector<1x1xf32>,
    } else {
    }
    %c0_i32_2 = arith.constant 0 : i32
    %5 = arith.cmpi eq, %arg1, %c0_i32_2 : i32
    %6 = arith.extui %5 : i1 to i32
    %c0_i32_3 = arith.constant 0 : i32
    %7 = arith.cmpi ne, %6, %c0_i32_3 : i32
    scf.if %7 {
      %cst_44 = arith.constant 0xFF800000 : f32
      %85 = vector.broadcast %cst_44 : f32 to vector<8x1xf32>
      %c0_45 = arith.constant 0 : index
      %c0_46 = arith.constant 0 : index
      %86 = vector.load %arg8[%c0_45, %c0_46] : memref<8x1xf32, #tpu.memory_space<vmem>>, vector<8x1xf32>
      tpu.vector_store %arg8[%c0_45, %c0_46], %85 {strides = array<i32>} : memref<8x1xf32, #tpu.memory_space<vmem>>, vector<8x1xf32>,
      %cst_47 = arith.constant 0.000000e+00 : f32
      %87 = vector.broadcast %cst_47 : f32 to vector<8x1xf32>
      %c0_48 = arith.constant 0 : index
      %c0_49 = arith.constant 0 : index
      %88 = vector.load %arg9[%c0_48, %c0_49] : memref<8x1xf32, #tpu.memory_space<vmem>>, vector<8x1xf32>
      tpu.vector_store %arg9[%c0_48, %c0_49], %87 {strides = array<i32>} : memref<8x1xf32, #tpu.memory_space<vmem>>, vector<8x1xf32>,
      %cst_50 = arith.constant 0.000000e+00 : f32
      %89 = vector.broadcast %cst_50 : f32 to vector<8x1xf32>
      %c0_51 = arith.constant 0 : index
      %c0_52 = arith.constant 0 : index
      %90 = vector.load %arg10[%c0_51, %c0_52] : memref<8x1xf32, #tpu.memory_space<vmem>>, vector<8x1xf32>
      tpu.vector_store %arg10[%c0_51, %c0_52], %89 {strides = array<i32>} : memref<8x1xf32, #tpu.memory_space<vmem>>, vector<8x1xf32>,
      %c0_53 = arith.constant 0 : index
      %91 = memref.load %arg2[%c0_53] : memref<1xf32, #tpu.memory_space<smem>>
      %92 = math.exp %91 : f32
      %c0_54 = arith.constant 0 : index
      %c0_55 = arith.constant 0 : index
      %93 = vector.load %arg3[%c0_54, %c0_55] : memref<8x32xf32, #tpu.memory_space<vmem>>, vector<8x32xf32>
      %94 = arith.mulf %93, %93 : vector<8x32xf32>
      %cst_56 = arith.constant dense<0.000000e+00> : vector<8xf32>
      %95 = vector.multi_reduction <add>, %94, %cst_56 [1] : vector<8x32xf32> to vector<8xf32>
      %96 = vector.shape_cast %95 : vector<8xf32> to vector<8x1xf32>
      %cst_57 = arith.constant 1.000000e-24 : f32
      %97 = vector.broadcast %cst_57 : f32 to vector<8x1xf32>
      %98 = arith.maximumf %96, %97 : vector<8x1xf32>
      %99 = math.rsqrt %98 : vector<8x1xf32>
      %100 = vector.broadcast %92 : f32 to vector<8x1xf32>
      %101 = arith.mulf %99, %100 : vector<8x1xf32>
      %c0_58 = arith.constant 0 : index
      %c0_59 = arith.constant 0 : index
      %102 = vector.load %arg7[%c0_58, %c0_59] : memref<8x1xf32, #tpu.memory_space<vmem>>, vector<8x1xf32>
      tpu.vector_store %arg7[%c0_58, %c0_59], %101 {strides = array<i32>} : memref<8x1xf32, #tpu.memory_space<vmem>>, vector<8x1xf32>,
    } else {
    }
    %c0_i32_4 = arith.constant 0 : i32
    %8 = arith.cmpi eq, %arg0, %c0_i32_4 : i32
    %9 = arith.extui %8 : i1 to i32
    %c0_i32_5 = arith.constant 0 : i32
    %10 = arith.cmpi ne, %9, %c0_i32_5 : i32
    scf.if %10 {
      %cst_44 = arith.constant 0xFF800000 : f32
      %85 = vector.broadcast %cst_44 : f32 to vector<1x8xf32>
      %86 = arith.index_cast %arg1 : i32 to index
      %c0_45 = arith.constant 0 : index
      %c0_46 = arith.constant 0 : index
      %87 = vector.load %arg12[%86, %c0_45, %c0_46] : memref<1x1x8xf32, #tpu.memory_space<vmem>>, vector<1x1x8xf32>
      %88 = vector.shape_cast %87 : vector<1x1x8xf32> to vector<1x8xf32>
      %89 = vector.shape_cast %85 : vector<1x8xf32> to vector<1x1x8xf32>
      tpu.vector_store %arg12[%86, %c0_45, %c0_46], %89 {strides = array<i32>} : memref<1x1x8xf32, #tpu.memory_space<vmem>>, vector<1x1x8xf32>,
      %cst_47 = arith.constant 0.000000e+00 : f32
      %90 = vector.broadcast %cst_47 : f32 to vector<1x8xf32>
      %91 = arith.index_cast %arg1 : i32 to index
      %c0_48 = arith.constant 0 : index
      %c0_49 = arith.constant 0 : index
      %92 = vector.load %arg13[%91, %c0_48, %c0_49] : memref<1x1x8xf32, #tpu.memory_space<vmem>>, vector<1x1x8xf32>
      %93 = vector.shape_cast %92 : vector<1x1x8xf32> to vector<1x8xf32>
      %94 = vector.shape_cast %90 : vector<1x8xf32> to vector<1x1x8xf32>
      tpu.vector_store %arg13[%91, %c0_48, %c0_49], %94 {strides = array<i32>} : memref<1x1x8xf32, #tpu.memory_space<vmem>>, vector<1x1x8xf32>,
      %c0_50 = arith.constant 0 : index
      %c0_51 = arith.constant 0 : index
      %95 = vector.load %arg4[%c0_50, %c0_51] : memref<8x32xf32, #tpu.memory_space<vmem>>, vector<8x32xf32>
      %cst_52 = arith.constant 1.000000e+00 : f32
      %96 = vector.broadcast %cst_52 : f32 to vector<1x32xf32>
      %97 = arith.mulf %95, %95 : vector<8x32xf32>
      %cst_53 = arith.constant dense<0.000000e+00> : vector<1x8xf32>
      %98 = tpu.matmul %96, %97, %cst_53 {dimension_numbers = #tpu.dot_dimension_numbers<[1], [1], [0], [0], [0, 0, 1, 0], [], []>} : vector<1x32xf32>, vector<8x32xf32>, vector<1x8xf32> -> vector<1x8xf32>
      %cst_54 = arith.constant 1.000000e-24 : f32
      %99 = vector.broadcast %cst_54 : f32 to vector<1x8xf32>
      %100 = arith.maximumf %98, %99 : vector<1x8xf32>
      %101 = math.rsqrt %100 : vector<1x8xf32>
      %102 = arith.index_cast %arg1 : i32 to index
      %c0_55 = arith.constant 0 : index
      %c0_56 = arith.constant 0 : index
      %103 = vector.load %arg11[%102, %c0_55, %c0_56] : memref<1x1x8xf32, #tpu.memory_space<vmem>>, vector<1x1x8xf32>
      %104 = vector.shape_cast %103 : vector<1x1x8xf32> to vector<1x8xf32>
      %105 = vector.shape_cast %101 : vector<1x8xf32> to vector<1x1x8xf32>
      tpu.vector_store %arg11[%102, %c0_55, %c0_56], %105 {strides = array<i32>} : memref<1x1x8xf32, #tpu.memory_space<vmem>>, vector<1x1x8xf32>,
    } else {
    }
    %c0 = arith.constant 0 : index
    %c0_6 = arith.constant 0 : index
    %11 = vector.load %arg3[%c0, %c0_6] : memref<8x32xf32, #tpu.memory_space<vmem>>, vector<8x32xf32>
    %c0_7 = arith.constant 0 : index
    %c0_8 = arith.constant 0 : index
    %12 = vector.load %arg4[%c0_7, %c0_8] : memref<8x32xf32, #tpu.memory_space<vmem>>, vector<8x32xf32>
    %cst = arith.constant dense<0.000000e+00> : vector<8x8xf32>
    %13 = tpu.matmul %11, %12, %cst {dimension_numbers = #tpu.dot_dimension_numbers<[1], [1], [0], [0], [0, 0, 1, 0], [], []>} : vector<8x32xf32>, vector<8x32xf32>, vector<8x8xf32> -> vector<8x8xf32>
    %c0_9 = arith.constant 0 : index
    %c0_10 = arith.constant 0 : index
    %14 = vector.load %arg7[%c0_9, %c0_10] : memref<8x1xf32, #tpu.memory_space<vmem>>, vector<8x1xf32>
    %15 = vector.broadcast %14 : vector<8x1xf32> to vector<8x8xf32>
    %16 = arith.mulf %13, %15 : vector<8x8xf32>
    %17 = arith.index_cast %arg1 : i32 to index
    %c0_11 = arith.constant 0 : index
    %c0_12 = arith.constant 0 : index
    %18 = vector.load %arg11[%17, %c0_11, %c0_12] : memref<1x1x8xf32, #tpu.memory_space<vmem>>, vector<1x1x8xf32>
    %19 = vector.shape_cast %18 : vector<1x1x8xf32> to vector<1x8xf32>
    %20 = vector.broadcast %19 : vector<1x8xf32> to vector<8x8xf32>
    %21 = arith.mulf %16, %20 : vector<8x8xf32>
    %cst_13 = arith.constant dense<0xFF800000> : vector<8xf32>
    %22 = vector.multi_reduction <maximumf>, %21, %cst_13 [1] : vector<8x8xf32> to vector<8xf32>
    %23 = vector.shape_cast %22 : vector<8xf32> to vector<8x1xf32>
    %cst_14 = arith.constant dense<0xFF800000> : vector<8xf32>
    %24 = vector.multi_reduction <maximumf>, %21, %cst_14 [0] : vector<8x8xf32> to vector<8xf32>
    %25 = vector.shape_cast %24 : vector<8xf32> to vector<1x8xf32>
    %c0_15 = arith.constant 0 : index
    %c0_16 = arith.constant 0 : index
    %26 = vector.load %arg8[%c0_15, %c0_16] : memref<8x1xf32, #tpu.memory_space<vmem>>, vector<8x1xf32>
    %27 = arith.index_cast %arg1 : i32 to index
    %c0_17 = arith.constant 0 : index
    %c0_18 = arith.constant 0 : index
    %28 = vector.load %arg12[%27, %c0_17, %c0_18] : memref<1x1x8xf32, #tpu.memory_space<vmem>>, vector<1x1x8xf32>
    %29 = vector.shape_cast %28 : vector<1x1x8xf32> to vector<1x8xf32>
    %30 = arith.maximumf %26, %23 : vector<8x1xf32>
    %31 = arith.maximumf %29, %25 : vector<1x8xf32>
    %cst_19 = arith.constant 1.000000e+00 : f32
    %32 = vector.broadcast %cst_19 : f32 to vector<8x1xf32>
    %cst_20 = arith.constant 1.000000e+00 : f32
    %33 = vector.broadcast %cst_20 : f32 to vector<1x8xf32>
    %cst_21 = arith.constant dense<0xFF800000> : vector<1xf32>
    %34 = vector.multi_reduction <maximumf>, %25, %cst_21 [1] : vector<1x8xf32> to vector<1xf32>
    %35 = vector.shape_cast %34 : vector<1xf32> to vector<1x1xf32>
    %36 = vector.broadcast %35 : vector<1x1xf32> to vector<8x8xf32>
    %37 = arith.subf %21, %36 : vector<8x8xf32>
    %38 = math.exp %37 : vector<8x8xf32>
    %cst_22 = arith.constant dense<0.000000e+00> : vector<8x1xf32>
    %39 = tpu.matmul %38, %32, %cst_22 {dimension_numbers = #tpu.dot_dimension_numbers<[1], [0], [0], [1], [0, 0, 1, 1], [], []>} : vector<8x8xf32>, vector<8x1xf32>, vector<8x1xf32> -> vector<8x1xf32>
    %cst_23 = arith.constant dense<0.000000e+00> : vector<1x8xf32>
    %40 = tpu.matmul %33, %38, %cst_23 {dimension_numbers = #tpu.dot_dimension_numbers<[1], [0], [0], [1], [0, 0, 1, 1], [], []>} : vector<1x8xf32>, vector<8x8xf32>, vector<1x8xf32> -> vector<1x8xf32>
    %41 = vector.broadcast %35 : vector<1x1xf32> to vector<8x1xf32>
    %42 = arith.subf %41, %30 : vector<8x1xf32>
    %43 = math.exp %42 : vector<8x1xf32>
    %44 = arith.mulf %39, %43 : vector<8x1xf32>
    %45 = vector.broadcast %35 : vector<1x1xf32> to vector<1x8xf32>
    %46 = arith.subf %45, %31 : vector<1x8xf32>
    %47 = math.exp %46 : vector<1x8xf32>
    %48 = arith.mulf %40, %47 : vector<1x8xf32>
    %c0_24 = arith.constant 0 : index
    %c0_25 = arith.constant 0 : index
    %49 = vector.load %arg9[%c0_24, %c0_25] : memref<8x1xf32, #tpu.memory_space<vmem>>, vector<8x1xf32>
    %50 = arith.subf %26, %30 : vector<8x1xf32>
    %51 = math.exp %50 : vector<8x1xf32>
    %52 = arith.mulf %49, %51 : vector<8x1xf32>
    %53 = arith.addf %52, %44 : vector<8x1xf32>
    %c0_26 = arith.constant 0 : index
    %c0_27 = arith.constant 0 : index
    %54 = vector.load %arg9[%c0_26, %c0_27] : memref<8x1xf32, #tpu.memory_space<vmem>>, vector<8x1xf32>
    tpu.vector_store %arg9[%c0_26, %c0_27], %53 {strides = array<i32>} : memref<8x1xf32, #tpu.memory_space<vmem>>, vector<8x1xf32>,
    %55 = arith.index_cast %arg1 : i32 to index
    %c0_28 = arith.constant 0 : index
    %c0_29 = arith.constant 0 : index
    %56 = vector.load %arg13[%55, %c0_28, %c0_29] : memref<1x1x8xf32, #tpu.memory_space<vmem>>, vector<1x1x8xf32>
    %57 = vector.shape_cast %56 : vector<1x1x8xf32> to vector<1x8xf32>
    %58 = arith.subf %29, %31 : vector<1x8xf32>
    %59 = math.exp %58 : vector<1x8xf32>
    %60 = arith.mulf %57, %59 : vector<1x8xf32>
    %61 = arith.addf %60, %48 : vector<1x8xf32>
    %62 = arith.index_cast %arg1 : i32 to index
    %c0_30 = arith.constant 0 : index
    %c0_31 = arith.constant 0 : index
    %63 = vector.load %arg13[%62, %c0_30, %c0_31] : memref<1x1x8xf32, #tpu.memory_space<vmem>>, vector<1x1x8xf32>
    %64 = vector.shape_cast %63 : vector<1x1x8xf32> to vector<1x8xf32>
    %65 = vector.shape_cast %61 : vector<1x8xf32> to vector<1x1x8xf32>
    tpu.vector_store %arg13[%62, %c0_30, %c0_31], %65 {strides = array<i32>} : memref<1x1x8xf32, #tpu.memory_space<vmem>>, vector<1x1x8xf32>,
    %c0_32 = arith.constant 0 : index
    %c0_33 = arith.constant 0 : index
    %66 = vector.load %arg8[%c0_32, %c0_33] : memref<8x1xf32, #tpu.memory_space<vmem>>, vector<8x1xf32>
    tpu.vector_store %arg8[%c0_32, %c0_33], %30 {strides = array<i32>} : memref<8x1xf32, #tpu.memory_space<vmem>>, vector<8x1xf32>,
    %67 = arith.index_cast %arg1 : i32 to index
    %c0_34 = arith.constant 0 : index
    %c0_35 = arith.constant 0 : index
    %68 = vector.load %arg12[%67, %c0_34, %c0_35] : memref<1x1x8xf32, #tpu.memory_space<vmem>>, vector<1x1x8xf32>
    %69 = vector.shape_cast %68 : vector<1x1x8xf32> to vector<1x8xf32>
    %70 = vector.shape_cast %31 : vector<1x8xf32> to vector<1x1x8xf32>
    tpu.vector_store %arg12[%67, %c0_34, %c0_35], %70 {strides = array<i32>} : memref<1x1x8xf32, #tpu.memory_space<vmem>>, vector<1x1x8xf32>,
    %71 = arith.cmpi eq, %arg0, %arg1 : i32
    %72 = arith.extui %71 : i1 to i32
    %c0_i32_36 = arith.constant 0 : i32
    %73 = arith.cmpi ne, %72, %c0_i32_36 : i32
    scf.if %73 {
      %85 = tpu.iota {dimensions = array<i32: 0>} : vector<8x8xi32>
      %86 = tpu.iota {dimensions = array<i32: 1>} : vector<8x8xi32>
      %87 = arith.cmpi eq, %85, %86 : vector<8x8xi32>
      %cst_44 = arith.constant 0.000000e+00 : f32
      %88 = vector.broadcast %cst_44 : f32 to vector<8x8xf32>
      %89 = arith.select %87, %21, %88 : vector<8x8xi1>, vector<8x8xf32>
      %cst_45 = arith.constant dense<0.000000e+00> : vector<8xf32>
      %90 = vector.multi_reduction <add>, %89, %cst_45 [1] : vector<8x8xf32> to vector<8xf32>
      %91 = vector.shape_cast %90 : vector<8xf32> to vector<8x1xf32>
      %c0_46 = arith.constant 0 : index
      %c0_47 = arith.constant 0 : index
      %92 = vector.load %arg10[%c0_46, %c0_47] : memref<8x1xf32, #tpu.memory_space<vmem>>, vector<8x1xf32>
      tpu.vector_store %arg10[%c0_46, %c0_47], %91 {strides = array<i32>} : memref<8x1xf32, #tpu.memory_space<vmem>>, vector<8x1xf32>,
    } else {
    }
    %c0_i32_37 = arith.constant 0 : i32
    %74 = arith.cmpi eq, %arg1, %c0_i32_37 : i32
    %75 = arith.extui %74 : i1 to i32
    %c0_i32_38 = arith.constant 0 : i32
    %76 = arith.cmpi ne, %75, %c0_i32_38 : i32
    scf.if %76 {
      %c0_44 = arith.constant 0 : index
      %c0_45 = arith.constant 0 : index
      %85 = vector.load %arg8[%c0_44, %c0_45] : memref<8x1xf32, #tpu.memory_space<vmem>>, vector<8x1xf32>
      %c0_46 = arith.constant 0 : index
      %c0_47 = arith.constant 0 : index
      %86 = vector.load %arg9[%c0_46, %c0_47] : memref<8x1xf32, #tpu.memory_space<vmem>>, vector<8x1xf32>
      %87 = math.log %86 : vector<8x1xf32>
      %88 = arith.addf %85, %87 : vector<8x1xf32>
      %c0_48 = arith.constant 0 : index
      %c0_49 = arith.constant 0 : index
      %89 = vector.load %arg14[%c0_48, %c0_49] : memref<1x1xf32, #tpu.memory_space<vmem>>, vector<1x1xf32>
      %c0_50 = arith.constant 0 : index
      %c0_51 = arith.constant 0 : index
      %90 = vector.load %arg10[%c0_50, %c0_51] : memref<8x1xf32, #tpu.memory_space<vmem>>, vector<8x1xf32>
      %cst_52 = arith.constant 2.000000e+00 : f32
      %91 = vector.broadcast %cst_52 : f32 to vector<8x1xf32>
      %92 = arith.mulf %91, %90 : vector<8x1xf32>
      %93 = arith.subf %88, %92 : vector<8x1xf32>
      %94 = vector.shape_cast %93 : vector<8x1xf32> to vector<1x8x1xf32>
      %cst_53 = arith.constant dense<0.000000e+00> : vector<1xf32>
      %95 = vector.multi_reduction <add>, %94, %cst_53 [1, 2] : vector<1x8x1xf32> to vector<1xf32>
      %96 = vector.shape_cast %95 : vector<1xf32> to vector<1x1x1xf32>
      %97 = vector.extract %96[0, 0, 0] : f32 from vector<1x1x1xf32>
      %98 = vector.broadcast %97 : f32 to vector<1x1xf32>
      %99 = arith.addf %89, %98 : vector<1x1xf32>
      %c0_54 = arith.constant 0 : index
      %c0_55 = arith.constant 0 : index
      %100 = vector.load %arg14[%c0_54, %c0_55] : memref<1x1xf32, #tpu.memory_space<vmem>>, vector<1x1xf32>
      tpu.vector_store %arg14[%c0_54, %c0_55], %99 {strides = array<i32>} : memref<1x1xf32, #tpu.memory_space<vmem>>, vector<1x1xf32>,
      %c0_56 = arith.constant 0 : index
      %c0_57 = arith.constant 0 : index
      %101 = vector.load %arg15[%c0_56, %c0_57] : memref<1x1xf32, #tpu.memory_space<vmem>>, vector<1x1xf32>
      %c0_58 = arith.constant 0 : index
      %c0_59 = arith.constant 0 : index
      %102 = vector.load %arg10[%c0_58, %c0_59] : memref<8x1xf32, #tpu.memory_space<vmem>>, vector<8x1xf32>
      %c0_60 = arith.constant 0 : index
      %c0_61 = arith.constant 0 : index
      %103 = vector.load %arg8[%c0_60, %c0_61] : memref<8x1xf32, #tpu.memory_space<vmem>>, vector<8x1xf32>
      %104 = arith.cmpf oge, %102, %103 : vector<8x1xf32>
      %105 = arith.extui %104 : vector<8x1xi1> to vector<8x1xi32>
      %106 = arith.sitofp %105 : vector<8x1xi32> to vector<8x1xf32>
      %107 = vector.shape_cast %106 : vector<8x1xf32> to vector<1x8x1xf32>
      %cst_62 = arith.constant dense<0.000000e+00> : vector<1xf32>
      %108 = vector.multi_reduction <add>, %107, %cst_62 [1, 2] : vector<1x8x1xf32> to vector<1xf32>
      %109 = vector.shape_cast %108 : vector<1xf32> to vector<1x1x1xf32>
      %110 = vector.extract %109[0, 0, 0] : f32 from vector<1x1x1xf32>
      %111 = vector.broadcast %110 : f32 to vector<1x1xf32>
      %112 = arith.addf %101, %111 : vector<1x1xf32>
      %c0_63 = arith.constant 0 : index
      %c0_64 = arith.constant 0 : index
      %113 = vector.load %arg15[%c0_63, %c0_64] : memref<1x1xf32, #tpu.memory_space<vmem>>, vector<1x1xf32>
      tpu.vector_store %arg15[%c0_63, %c0_64], %112 {strides = array<i32>} : memref<1x1xf32, #tpu.memory_space<vmem>>, vector<1x1xf32>,
    } else {
    }
    %c0_i32_39 = arith.constant 0 : i32
    %77 = arith.cmpi eq, %arg0, %c0_i32_39 : i32
    %78 = arith.extui %77 : i1 to i32
    %c0_i32_40 = arith.constant 0 : i32
    %79 = arith.cmpi ne, %78, %c0_i32_40 : i32
    scf.if %79 {
      %85 = arith.index_cast %arg1 : i32 to index
      %c0_44 = arith.constant 0 : index
      %c0_45 = arith.constant 0 : index
      %86 = vector.load %arg12[%85, %c0_44, %c0_45] : memref<1x1x8xf32, #tpu.memory_space<vmem>>, vector<1x1x8xf32>
      %87 = vector.shape_cast %86 : vector<1x1x8xf32> to vector<1x8xf32>
      %88 = arith.index_cast %arg1 : i32 to index
      %c0_46 = arith.constant 0 : index
      %c0_47 = arith.constant 0 : index
      %89 = vector.load %arg13[%88, %c0_46, %c0_47] : memref<1x1x8xf32, #tpu.memory_space<vmem>>, vector<1x1x8xf32>
      %90 = vector.shape_cast %89 : vector<1x1x8xf32> to vector<1x8xf32>
      %91 = math.log %90 : vector<1x8xf32>
      %92 = arith.addf %87, %91 : vector<1x8xf32>
      %c0_48 = arith.constant 0 : index
      %c0_49 = arith.constant 0 : index
      %93 = vector.load %arg14[%c0_48, %c0_49] : memref<1x1xf32, #tpu.memory_space<vmem>>, vector<1x1xf32>
      %94 = vector.shape_cast %92 : vector<1x8xf32> to vector<1x1x8xf32>
      %cst_50 = arith.constant dense<0.000000e+00> : vector<1xf32>
      %95 = vector.multi_reduction <add>, %94, %cst_50 [1, 2] : vector<1x1x8xf32> to vector<1xf32>
      %96 = vector.shape_cast %95 : vector<1xf32> to vector<1x1x1xf32>
      %97 = vector.extract %96[0, 0, 0] : f32 from vector<1x1x1xf32>
      %98 = vector.broadcast %97 : f32 to vector<1x1xf32>
      %99 = arith.addf %93, %98 : vector<1x1xf32>
      %c0_51 = arith.constant 0 : index
      %c0_52 = arith.constant 0 : index
      %100 = vector.load %arg14[%c0_51, %c0_52] : memref<1x1xf32, #tpu.memory_space<vmem>>, vector<1x1xf32>
      tpu.vector_store %arg14[%c0_51, %c0_52], %99 {strides = array<i32>} : memref<1x1xf32, #tpu.memory_space<vmem>>, vector<1x1xf32>,
    } else {
    }
    %c0_i32_41 = arith.constant 0 : i32
    %80 = arith.cmpi eq, %arg0, %c0_i32_41 : i32
    %c0_i32_42 = arith.constant 0 : i32
    %81 = arith.cmpi eq, %arg1, %c0_i32_42 : i32
    %82 = arith.andi %80, %81 : i1
    %83 = arith.extui %82 : i1 to i32
    %c0_i32_43 = arith.constant 0 : i32
    %84 = arith.cmpi ne, %83, %c0_i32_43 : i32
    scf.if %84 {
      %c0_44 = arith.constant 0 : index
      %c0_45 = arith.constant 0 : index
      %85 = vector.load %arg14[%c0_44, %c0_45] : memref<1x1xf32, #tpu.memory_space<vmem>>, vector<1x1xf32>
      %cst_46 = arith.constant 6.250000e-02 : f32
      %86 = vector.broadcast %cst_46 : f32 to vector<1x1xf32>
      %87 = arith.mulf %85, %86 : vector<1x1xf32>
      %c0_47 = arith.constant 0 : index
      %c0_48 = arith.constant 0 : index
      %88 = vector.load %arg5[%c0_47, %c0_48] : memref<1x1xf32, #tpu.memory_space<vmem>>, vector<1x1xf32>
      tpu.vector_store %arg5[%c0_47, %c0_48], %87 {strides = array<i32>} : memref<1x1xf32, #tpu.memory_space<vmem>>, vector<1x1xf32>,
      %c0_49 = arith.constant 0 : index
      %c0_50 = arith.constant 0 : index
      %89 = vector.load %arg15[%c0_49, %c0_50] : memref<1x1xf32, #tpu.memory_space<vmem>>, vector<1x1xf32>
      %cst_51 = arith.constant 1.250000e+01 : f32
      %90 = vector.broadcast %cst_51 : f32 to vector<1x1xf32>
      %91 = arith.mulf %89, %90 : vector<1x1xf32>
      %c0_52 = arith.constant 0 : index
      %c0_53 = arith.constant 0 : index
      %92 = vector.load %arg6[%c0_52, %c0_53] : memref<1x1xf32, #tpu.memory_space<vmem>>, vector<1x1xf32>
      tpu.vector_store %arg6[%c0_52, %c0_53], %91 {strides = array<i32>} : memref<1x1xf32, #tpu.memory_space<vmem>>, vector<1x1xf32>,
    } else {
    }
    return
  }
  func.func @transform_0(%arg0: i32, %arg1: i32) -> i32 {
    %c0_i32 = arith.constant 0 : i32
    %c0_i32_0 = arith.constant 0 : i32
    return %c0_i32 : i32
  }
  func.func @transform_1(%arg0: i32, %arg1: i32) -> (i32, i32) {
    %c0_i32 = arith.constant 0 : i32
    %c0_i32_0 = arith.constant 0 : i32
    return %arg0, %c0_i32 : i32, i32
  }
  func.func @transform_2(%arg0: i32, %arg1: i32) -> (i32, i32) {
    %c0_i32 = arith.constant 0 : i32
    %c0_i32_0 = arith.constant 0 : i32
    return %arg1, %c0_i32 : i32, i32
  }
  func.func @transform_3(%arg0: i32, %arg1: i32) -> (i32, i32) {
    %c0_i32 = arith.constant 0 : i32
    %c0_i32_0 = arith.constant 0 : i32
    %c0_i32_1 = arith.constant 0 : i32
    return %c0_i32, %c0_i32_0 : i32, i32
  }
  func.func @transform_4(%arg0: i32, %arg1: i32) -> (i32, i32) {
    %c0_i32 = arith.constant 0 : i32
    %c0_i32_0 = arith.constant 0 : i32
    %c0_i32_1 = arith.constant 0 : i32
    return %c0_i32, %c0_i32_0 : i32, i32
  }
}

</mosaic_0001>

<llo_original>
// kernel: tpu_custom_call.1
$region0: #{tpu_custom_call.1}
  #allocation0 [shape = 'u32[]', space=smem, size = 0x4, offset = 0x4, fixed_abs, tag = 'smem constant byte address 0x4 - core index']
  #allocation1 [shape = 'u32[144,128]{1,0:T(1,128)}', space=vmem, size = 0x12000, scoped, tag = 'internal scratch']
  #allocation2 [shape = 'f32[8,1]{1,0:T(8,128)}', space=vmem, size = 0x1000, scoped, tag = 'scratch operand']
  #allocation3 [shape = 'f32[8,1]{1,0:T(8,128)}', space=vmem, size = 0x1000, scoped, tag = 'scratch operand']
  #allocation4 [shape = 'f32[8,1]{1,0:T(8,128)}', space=vmem, size = 0x1000, scoped, tag = 'scratch operand']
  #allocation5 [shape = 'f32[8,1]{1,0:T(8,128)}', space=vmem, size = 0x1000, scoped, tag = 'scratch operand']
  #allocation6 [shape = 'f32[1,1,8]{2,1,0:T(1,128)}', space=vmem, size = 0x200, scoped, tag = 'scratch operand']
  #allocation7 [shape = 'f32[1,1,8]{2,1,0:T(1,128)}', space=vmem, size = 0x200, scoped, tag = 'scratch operand']
  #allocation8 [shape = 'f32[1,1,8]{2,1,0:T(1,128)}', space=vmem, size = 0x200, scoped, tag = 'scratch operand']
  #allocation9 [shape = 'f32[1,1]{1,0:T(1,128)}', space=vmem, size = 0x200, scoped, tag = 'scratch operand']
  #allocation10 [shape = 'f32[1,1]{1,0:T(1,128)}', space=vmem, size = 0x200, scoped, tag = 'scratch operand']
  #allocation11 [shape = 'f32[1]{0:T(128)S(6)}', space=smem, size = 0x200, scoped, tag = 'scoped memory for tpu_custom_call.1']
  %s0 = inlined_call_operand.<no memory space> [shape: f32[1], index: 0, kind: input, shape index: {}]
  %s1 = inlined_call_operand.hbm [shape: f32[8,32], index: 1, kind: input, shape index: {}]
  %s2 = inlined_call_operand.hbm [shape: f32[8,32], index: 2, kind: input, shape index: {}]
  %s3 = inlined_call_operand.hbm [shape: f32[1,1], index: 3, kind: output, shape index: {0}]
  %s4 = inlined_call_operand.hbm [shape: f32[1,1], index: 4, kind: output, shape index: {1}]
  %5 = xla_tuple %s3, %s4
  %s6 = sld [smem:[#allocation0]]
  $region66: #{tpu_custom_call.1} parent=0
    _
  %s8 = ssub.s32 1, %s6
  %s9 = scalar_select 0, %s8, %s6
  %10 = sst [smem:[#allocation11]] %s0
  $region1: #{tpu_custom_call.1} parent=0
    #allocation12 [shape = 'u8[4096]{0}', space=vmem, size = 0x1000, scoped, tag = 'input window, operand 1, single buffered']
    #allocation13 [shape = 's32[1]{0}', space=sflag, size = 0x4, scoped, tag = 'scoped memory for tpu_custom_call.1']
    #allocation14 [shape = 's32[1]{0}', space=sflag, size = 0x4, scoped, tag = 'scoped memory for tpu_custom_call.1']
    #allocation15 [shape = 'u8[4096]{0}', space=vmem, size = 0x1000, scoped, tag = 'input window, operand 2, single buffered']
    #allocation16 [shape = 's32[1]{0}', space=sflag, size = 0x4, scoped, tag = 'scoped memory for tpu_custom_call.1']
    #allocation17 [shape = 'u8[512]{0}', space=vmem, size = 0x400, scoped, tag = 'output window, operand 0, single buffered']
    #allocation18 [shape = 'u8[512]{0}', space=vmem, size = 0x400, scoped, tag = 'output window, operand 1, single buffered']
    #allocation19 [shape = 's32[1]{0}', space=sflag, size = 0x4, scoped, tag = 'scoped memory for tpu_custom_call.1']
    %11 = vsyncpa [#allocation13], 0
    %12 = vsyncpa [#allocation16], 0
    %13 = vsyncpa [#allocation14], 0
    %14 = vsyncpa [#allocation19], 0
    // Predicated region
    $region2: #{tpu_custom_call.1} parent=1 // pred_check
      _
    $region3: #{tpu_custom_call.1} parent=1 // pred_check_branch
      %16 = sbr.rel (0) target = $region5
    $region4: #{tpu_custom_call.1} parent=1 // pred_region
      _
    $region5: #{tpu_custom_call.1} parent=1 // pred_fallthru
      _
    // Predicated region
    $region6: #{tpu_custom_call.1} parent=1 // pred_check
      _
    $region7: #{tpu_custom_call.1} parent=1 // pred_check_branch
      %18 = sbr.rel (0) target = $region9
    $region8: #{tpu_custom_call.1} parent=1 // pred_region
      %s20 = ssub.s32 128, 128
      %21 = vsyncadd [#allocation13], %s20
      %s23 = sshll.u32 [#allocation12], 4
      %s24 = int_to_ptr.vmem [resolvable:$true] %s23
      %26 = dma.hbm_to_vmem [thread:$0]  %s1, 128, %s24, [#allocation13]
    $region9: #{tpu_custom_call.1} parent=1 // pred_fallthru
      _
    // Predicated region
    $region10: #{tpu_custom_call.1} parent=1 // pred_check
      _
    $region11: #{tpu_custom_call.1} parent=1 // pred_check_branch
      %28 = sbr.rel (0) target = $region13
    $region12: #{tpu_custom_call.1} parent=1 // pred_region
      %s30 = ssub.s32 128, 128
      %31 = vsyncadd [#allocation16], %s30
      %s33 = sshll.u32 [#allocation15], 4
      %s34 = int_to_ptr.vmem [resolvable:$true] %s33
      %36 = dma.hbm_to_vmem [thread:$0]  %s2, 128, %s34, [#allocation16]
    $region13: #{tpu_custom_call.1} parent=1 // pred_fallthru
      _
    // Predicated region
    $region14: #{tpu_custom_call.1} parent=1 // pred_check
      _
    $region15: #{tpu_custom_call.1} parent=1 // pred_check_branch
      %38 = sbr.rel (0) target = $region17
    $region16: #{tpu_custom_call.1} parent=1 // pred_region
      %39 = dma.done [#allocation13], 128
    $region17: #{tpu_custom_call.1} parent=1 // pred_fallthru
      _
    // Predicated region
    $region18: #{tpu_custom_call.1} parent=1 // pred_check
      _
    $region19: #{tpu_custom_call.1} parent=1 // pred_check_branch
      %41 = sbr.rel (0) target = $region21
    $region20: #{tpu_custom_call.1} parent=1 // pred_region
      %42 = dma.done [#allocation16], 128
    $region21: #{tpu_custom_call.1} parent=1 // pred_fallthru
      _
    %p43 = scmp.eq.s32.totalorder 0, 0
    %p44 = scmp.eq.s32.totalorder 0, 0
    %p45 = pnand %p43, %p44
    %p46 = pneg %p45
    // Predicated region
    $region22: #{tpu_custom_call.1} parent=1 // pred_check
      _
    $region23: #{tpu_custom_call.1} parent=1 // pred_check_branch
      %48 = sbr.rel (%p45) target = $region25
    $region24: #{tpu_custom_call.1} parent=1 // pred_region
      %vm49 = vcmask 0
      %50 = vst.msk [vmem:[#allocation9] sm:$0x1] %vm49, 0.0
      %51 = vst.msk [vmem:[#allocation10] sm:$0x1] %vm49, 0.0
    $region25: #{tpu_custom_call.1} parent=1 // pred_fallthru
      _
    // Predicated region
    $region26: #{tpu_custom_call.1} parent=1 // pred_check
      %p52 = pneg %p44
    $region27: #{tpu_custom_call.1} parent=1 // pred_check_branch
      %54 = sbr.rel (%p52) target = $region29
    $region28: #{tpu_custom_call.1} parent=1 // pred_region
      %vm55 = vcmask 7168
      %56 = vst.msk [vmem:[#allocation3] sm:$0xff] %vm55, -inf
      %57 = vst.msk [vmem:[#allocation4] sm:$0xff] %vm55, 0.0
      %58 = vst.msk [vmem:[#allocation5] sm:$0xff] %vm55, 0.0
      %s59 = sld [smem:[#allocation11]]
      %v60 = vstv %s59
      %v61 = vmul.f32 %v60, 1.442695
      %v62 = vpow.pop %v61
      %s63 = vtos %v62
      %v64 = vld [vmem:[#allocation12] sm:$0xff]
      %v65 = vmul.f32 %v64, %v64
      %vm66 = vcmask 261120
      %v67 = vsel %vm66, %v65, 0.0
      %68 = vadd.xlane.f32.xlu0 %v67
      %v69 = vpop.xlane.xlu0 %68
      %v70 = vmax.f32 %v69, 1e-24
      %v71 = vrsqrt.pop %v70
      %v72 = vstv %s63
      %v73 = vmul.f32 %v71, %v72
      %74 = vst.msk [vmem:[#allocation2] sm:$0xff] %vm55, %v73
    $region29: #{tpu_custom_call.1} parent=1 // pred_fallthru
      _
    // Predicated region
    $region30: #{tpu_custom_call.1} parent=1 // pred_check
      %p75 = pneg %p43
    $region31: #{tpu_custom_call.1} parent=1 // pred_check_branch
      %77 = sbr.rel (%p75) target = $region33
    $region32: #{tpu_custom_call.1} parent=1 // pred_region
      %vm78 = vcmask 57344
      %79 = vst.msk [vmem:[#allocation7] sm:$0x1] %vm78, -inf
      %80 = vst.msk [vmem:[#allocation8] sm:$0x1] %vm78, 0.0
      %v81 = vld [vmem:[#allocation15] sm:$0xff]
      %v82 = vmul.f32 %v81, %v81
      %vm83 = vcmask 261120
      %v85 = vsel %vm83, 1.0, 0
      %v88 = vsel %vm83, %v82, 0
      %90 = vmatprep.subr.mxu0 0.0
      %91 = vmatpush1.xpose.msra.mxu0 %v88
      %92 = vmatprep.subr.mxu0 0.0
      %93 = vmatpush1.xpose.msra.mxu0 0.0
      %94 = vmatprep.subr.mxu0 0.0
      %95 = vmatpush1.xpose.msra.mxu0 0.0
      %96 = vmatprep.subr.mxu0 0.0
      %97 = vmatpush1.xpose.msra.mxu0 0.0
      %98 = vmatprep.subr.mxu0 0.0
      %99 = vmatpush1.xpose.msra.mxu0 0.0
      %100 = vmatprep.subr.mxu0 0.0
      %101 = vmatpush1.xpose.msra.mxu0 0.0
      %102 = vmatprep.subr.mxu0 0.0
      %103 = vmatpush1.xpose.msra.mxu0 0.0
      %104 = vmatprep.subr.mxu0 0.0
      %105 = vmatpush1.xpose.msra.mxu0 0.0
      %106 = vmatprep.subr.mxu0 0.0
      %107 = vmatpush1.xpose.msra.mxu0 0.0
      %108 = vmatprep.subr.mxu0 0.0
      %109 = vmatpush1.xpose.msra.mxu0 0.0
      %110 = vmatprep.subr.mxu0 0.0
      %111 = vmatpush1.xpose.msra.mxu0 0.0
      %112 = vmatprep.subr.mxu0 0.0
      %113 = vmatpush1.xpose.msra.mxu0 0.0
      %114 = vmatprep.subr.mxu0 0.0
      %115 = vmatpush1.xpose.msra.mxu0 0.0
      %116 = vmatprep.subr.mxu0 0.0
      %117 = vmatpush1.xpose.msra.mxu0 0.0
      %118 = vmatprep.subr.mxu0 0.0
      %119 = vmatpush1.xpose.msra.mxu0 0.0
      %120 = vmatprep.subr.mxu0 0.0
      %121 = vmatpush1.xpose.msra.mxu0 0.0
      %122 = vmatprep.subr.mxu0 0.0
      %123 = vmatpush1.xpose.msra.mxu0 0.0
      %124 = vmatprep.subr.mxu0 0.0
      %125 = vmatpush1.xpose.msra.mxu0 0.0
      %126 = vmatprep.subr.mxu0 0.0
      %127 = vmatpush1.xpose.msra.mxu0 0.0
      %128 = vmatprep.subr.mxu0 0.0
      %129 = vmatpush1.xpose.msra.mxu0 0.0
      %130 = vmatprep.subr.mxu0 0.0
      %131 = vmatpush1.xpose.msra.mxu0 0.0
      %132 = vmatprep.subr.mxu0 0.0
      %133 = vmatpush1.xpose.msra.mxu0 0.0
      %134 = vmatprep.subr.mxu0 0.0
      %135 = vmatpush1.xpose.msra.mxu0 0.0
      %136 = vmatprep.subr.mxu0 0.0
      %137 = vmatpush1.xpose.msra.mxu0 0.0
      %138 = vmatprep.subr.mxu0 0.0
      %139 = vmatpush1.xpose.msra.mxu0 0.0
      %140 = vmatprep.subr.mxu0 0.0
      %141 = vmatpush1.xpose.msra.mxu0 0.0
      %142 = vmatprep.subr.mxu0 0.0
      %143 = vmatpush1.xpose.msra.mxu0 0.0
      %144 = vmatprep.subr.mxu0 0.0
      %145 = vmatpush1.xpose.msra.mxu0 0.0
      %146 = vmatprep.subr.mxu0 0.0
      %147 = vmatpush1.xpose.msra.mxu0 0.0
      %148 = vmatprep.subr.mxu0 0.0
      %149 = vmatpush1.xpose.msra.mxu0 0.0
      %150 = vmatprep.subr.mxu0 0.0
      %151 = vmatpush1.xpose.msra.mxu0 0.0
      %152 = vmatprep.subr.mxu0 0.0
      %153 = vmatpush1.xpose.msra.mxu0 0.0
      %154 = vmatprep.mubr.f32.mxu0 0.0
      %155 = vmatmul.mubr.f32.gmra.mrb[0].mxu0 %v85
      %v156 = vpop.f32.mrb[0].mxu0
      %v157 = vadd.f32 0.0, %v156
      %v158 = vpop.f32.mrb[0].mxu0
      %159 = vdwg.mxu0
      %v160 = vmax.f32 %v157, 1e-24
      %v161 = vrsqrt.pop %v160
      %162 = vst.msk [vmem:[#allocation6] sm:$0x1] %vm78, %v161
    $region33: #{tpu_custom_call.1} parent=1 // pred_fallthru
      _
    %v163 = vld [vmem:[#allocation12] sm:$0xff]
    %v164 = vld [vmem:[#allocation15] sm:$0xff]
    %vm165 = vcmask 261120
    %v167 = vsel %vm165, %v163, 0
    %v170 = vsel %vm165, %v164, 0
    %172 = vmatprep.subr.mxu0 0.0
    %173 = vmatpush1.xpose.msra.mxu0 %v170
    %174 = vmatprep.subr.mxu0 0.0
    %175 = vmatpush1.xpose.msra.mxu0 0.0
    %176 = vmatprep.subr.mxu0 0.0
    %177 = vmatpush1.xpose.msra.mxu0 0.0
    %178 = vmatprep.subr.mxu0 0.0
    %179 = vmatpush1.xpose.msra.mxu0 0.0
    %180 = vmatprep.subr.mxu0 0.0
    %181 = vmatpush1.xpose.msra.mxu0 0.0
    %182 = vmatprep.subr.mxu0 0.0
    %183 = vmatpush1.xpose.msra.mxu0 0.0
    %184 = vmatprep.subr.mxu0 0.0
    %185 = vmatpush1.xpose.msra.mxu0 0.0
    %186 = vmatprep.subr.mxu0 0.0
    %187 = vmatpush1.xpose.msra.mxu0 0.0
    %188 = vmatprep.subr.mxu0 0.0
    %189 = vmatpush1.xpose.msra.mxu0 0.0
    %190 = vmatprep.subr.mxu0 0.0
    %191 = vmatpush1.xpose.msra.mxu0 0.0
    %192 = vmatprep.subr.mxu0 0.0
    %193 = vmatpush1.xpose.msra.mxu0 0.0
    %194 = vmatprep.subr.mxu0 0.0
    %195 = vmatpush1.xpose.msra.mxu0 0.0
    %196 = vmatprep.subr.mxu0 0.0
    %197 = vmatpush1.xpose.msra.mxu0 0.0
    %198 = vmatprep.subr.mxu0 0.0
    %199 = vmatpush1.xpose.msra.mxu0 0.0
    %200 = vmatprep.subr.mxu0 0.0
    %201 = vmatpush1.xpose.msra.mxu0 0.0
    %202 = vmatprep.subr.mxu0 0.0
    %203 = vmatpush1.xpose.msra.mxu0 0.0
    %204 = vmatprep.subr.mxu0 0.0
    %205 = vmatpush1.xpose.msra.mxu0 0.0
    %206 = vmatprep.subr.mxu0 0.0
    %207 = vmatpush1.xpose.msra.mxu0 0.0
    %208 = vmatprep.subr.mxu0 0.0
    %209 = vmatpush1.xpose.msra.mxu0 0.0
    %210 = vmatprep.subr.mxu0 0.0
    %211 = vmatpush1.xpose.msra.mxu0 0.0
    %212 = vmatprep.subr.mxu0 0.0
    %213 = vmatpush1.xpose.msra.mxu0 0.0
    %214 = vmatprep.subr.mxu0 0.0
    %215 = vmatpush1.xpose.msra.mxu0 0.0
    %216 = vmatprep.subr.mxu0 0.0
    %217 = vmatpush1.xpose.msra.mxu0 0.0
    %218 = vmatprep.subr.mxu0 0.0
    %219 = vmatpush1.xpose.msra.mxu0 0.0
    %220 = vmatprep.subr.mxu0 0.0
    %221 = vmatpush1.xpose.msra.mxu0 0.0
    %222 = vmatprep.subr.mxu0 0.0
    %223 = vmatpush1.xpose.msra.mxu0 0.0
    %224 = vmatprep.subr.mxu0 0.0
    %225 = vmatpush1.xpose.msra.mxu0 0.0
    %226 = vmatprep.subr.mxu0 0.0
    %227 = vmatpush1.xpose.msra.mxu0 0.0
    %228 = vmatprep.subr.mxu0 0.0
    %229 = vmatpush1.xpose.msra.mxu0 0.0
    %230 = vmatprep.subr.mxu0 0.0
    %231 = vmatpush1.xpose.msra.mxu0 0.0
    %232 = vmatprep.subr.mxu0 0.0
    %233 = vmatpush1.xpose.msra.mxu0 0.0
    %234 = vmatprep.subr.mxu0 0.0
    %235 = vmatpush1.xpose.msra.mxu0 0.0
    %236 = vmatprep.mubr.f32.mxu0 0.0
    %237 = vmatmul.mubr.f32.gmra.mrb[0].mxu0 %v167
    %v238 = vpop.f32.mrb[0].mxu0
    %v239 = vadd.f32 0.0, %v238
    %v240 = vpop.f32.mrb[0].mxu0
    %241 = vdwg.mxu0
    %v242 = vld [vmem:[#allocation2] sm:$0xff]
    %244 = vset.pattern.permute.xlu0 0
    %245 = vperm.xlu0 %244, %v242
    %v246 = vpop.permute.xlu0 %245
    %v248 = vmul.f32 %v239, %v246
    %v249 = vld [vmem:[#allocation6] sm:$0x1]
    %v251 = vlaneseq
    %v252 = vshrl.u32 %v251, 7
    %v253 = vsub.s32 0, %v252
    %v254 = vrot.slane %v249, %v253
    %v256 = vmul.f32 %v248, %v254
    %vm257 = vcmask 64512
    %v258 = vsel %vm257, %v256, -inf
    %259 = vmax.xlane.f32.xlu0 %v258
    %v260 = vpop.xlane.xlu0 %259
    %v261 = vrot.slane %v258, 4
    %v262 = vmax.f32 %v258, %v261
    %v263 = vrot.slane %v262, 2
    %v264 = vmax.f32 %v262, %v263
    %v265 = vrot.slane %v264, 1
    %v266 = vmax.f32 %v264, %v265
    %v267 = vld [vmem:[#allocation3] sm:$0xff]
    %v268 = vld [vmem:[#allocation7] sm:$0x1]
    %v269 = vmax.f32 %v267, %v260
    %v270 = vmax.f32 %v268, %v266
    %v271 = vsel %vm257, %v266, -inf
    %272 = vmax.xlane.f32.xlu0 %v271
    %v273 = vpop.xlane.xlu0 %272
    %v274 = vsub.f32 %v256, %v273
    %v275 = vmul.f32 %v274, 1.442695
    %v276 = vpow.pop %v275
    %v278 = vsel %vm257, %v276, 0
    %280 = vmatprep.subr.mxu0 0.0
    %281 = vmatpush1.msra.mxu0 1.0
    %282 = vmatprep.subr.mxu0 0.0
    %283 = vmatpush1.msra.mxu0 0.0
    %284 = vmatprep.subr.mxu0 0.0
    %285 = vmatpush1.msra.mxu0 0.0
    %286 = vmatprep.subr.mxu0 0.0
    %287 = vmatpush1.msra.mxu0 0.0
    %288 = vmatprep.subr.mxu0 0.0
    %289 = vmatpush1.msra.mxu0 0.0
    %290 = vmatprep.subr.mxu0 0.0
    %291 = vmatpush1.msra.mxu0 0.0
    %292 = vmatprep.subr.mxu0 0.0
    %293 = vmatpush1.msra.mxu0 0.0
    %294 = vmatprep.subr.mxu0 0.0
    %295 = vmatpush1.msra.mxu0 0.0
    %296 = vmatprep.subr.mxu0 0.0
    %297 = vmatpush1.msra.mxu0 0.0
    %298 = vmatprep.subr.mxu0 0.0
    %299 = vmatpush1.msra.mxu0 0.0
    %300 = vmatprep.subr.mxu0 0.0
    %301 = vmatpush1.msra.mxu0 0.0
    %302 = vmatprep.subr.mxu0 0.0
    %303 = vmatpush1.msra.mxu0 0.0
    %304 = vmatprep.subr.mxu0 0.0
    %305 = vmatpush1.msra.mxu0 0.0
    %306 = vmatprep.subr.mxu0 0.0
    %307 = vmatpush1.msra.mxu0 0.0
    %308 = vmatprep.subr.mxu0 0.0
    %309 = vmatpush1.msra.mxu0 0.0
    %310 = vmatprep.subr.mxu0 0.0
    %311 = vmatpush1.msra.mxu0 0.0
    %312 = vmatprep.subr.mxu0 0.0
    %313 = vmatpush1.msra.mxu0 0.0
    %314 = vmatprep.subr.mxu0 0.0
    %315 = vmatpush1.msra.mxu0 0.0
    %316 = vmatprep.subr.mxu0 0.0
    %317 = vmatpush1.msra.mxu0 0.0
    %318 = vmatprep.subr.mxu0 0.0
    %319 = vmatpush1.msra.mxu0 0.0
    %320 = vmatprep.subr.mxu0 0.0
    %321 = vmatpush1.msra.mxu0 0.0
    %322 = vmatprep.subr.mxu0 0.0
    %323 = vmatpush1.msra.mxu0 0.0
    %324 = vmatprep.subr.mxu0 0.0
    %325 = vmatpush1.msra.mxu0 0.0
    %326 = vmatprep.subr.mxu0 0.0
    %327 = vmatpush1.msra.mxu0 0.0
    %328 = vmatprep.subr.mxu0 0.0
    %329 = vmatpush1.msra.mxu0 0.0
    %330 = vmatprep.subr.mxu0 0.0
    %331 = vmatpush1.msra.mxu0 0.0
    %332 = vmatprep.subr.mxu0 0.0
    %333 = vmatpush1.msra.mxu0 0.0
    %334 = vmatprep.subr.mxu0 0.0
    %335 = vmatpush1.msra.mxu0 0.0
    %336 = vmatprep.subr.mxu0 0.0
    %337 = vmatpush1.msra.mxu0 0.0
    %338 = vmatprep.subr.mxu0 0.0
    %339 = vmatpush1.msra.mxu0 0.0
    %340 = vmatprep.subr.mxu0 0.0
    %341 = vmatpush1.msra.mxu0 0.0
    %342 = vmatprep.subr.mxu0 0.0
    %343 = vmatpush1.msra.mxu0 0.0
    %344 = vmatprep.mubr.f32.mxu0 0.0
    %345 = vmatmul.mubr.f32.gmra.mrb[0].mxu0 %v278
    %v346 = vpop.f32.mrb[0].mxu0
    %v347 = vadd.f32 0.0, %v346
    %v348 = vpop.f32.mrb[0].mxu0
    %349 = vdwg.mxu0
    %v351 = vsel %vm257, 1.0, 0
    %353 = vmatprep.subr.mxu0 0.0
    %354 = vmatpush1.msra.mxu0 %v276
    %355 = vmatprep.subr.mxu0 0.0
    %356 = vmatpush1.msra.mxu0 0.0
    %357 = vmatprep.subr.mxu0 0.0
    %358 = vmatpush1.msra.mxu0 0.0
    %359 = vmatprep.subr.mxu0 0.0
    %360 = vmatpush1.msra.mxu0 0.0
    %361 = vmatprep.subr.mxu0 0.0
    %362 = vmatpush1.msra.mxu0 0.0
    %363 = vmatprep.subr.mxu0 0.0
    %364 = vmatpush1.msra.mxu0 0.0
    %365 = vmatprep.subr.mxu0 0.0
    %366 = vmatpush1.msra.mxu0 0.0
    %367 = vmatprep.subr.mxu0 0.0
    %368 = vmatpush1.msra.mxu0 0.0
    %369 = vmatprep.subr.mxu0 0.0
    %370 = vmatpush1.msra.mxu0 0.0
    %371 = vmatprep.subr.mxu0 0.0
    %372 = vmatpush1.msra.mxu0 0.0
    %373 = vmatprep.subr.mxu0 0.0
    %374 = vmatpush1.msra.mxu0 0.0
    %375 = vmatprep.subr.mxu0 0.0
    %376 = vmatpush1.msra.mxu0 0.0
    %377 = vmatprep.subr.mxu0 0.0
    %378 = vmatpush1.msra.mxu0 0.0
    %379 = vmatprep.subr.mxu0 0.0
    %380 = vmatpush1.msra.mxu0 0.0
    %381 = vmatprep.subr.mxu0 0.0
    %382 = vmatpush1.msra.mxu0 0.0
    %383 = vmatprep.subr.mxu0 0.0
    %384 = vmatpush1.msra.mxu0 0.0
    %385 = vmatprep.subr.mxu0 0.0
    %386 = vmatpush1.msra.mxu0 0.0
    %387 = vmatprep.subr.mxu0 0.0
    %388 = vmatpush1.msra.mxu0 0.0
    %389 = vmatprep.subr.mxu0 0.0
    %390 = vmatpush1.msra.mxu0 0.0
    %391 = vmatprep.subr.mxu0 0.0
    %392 = vmatpush1.msra.mxu0 0.0
    %393 = vmatprep.subr.mxu0 0.0
    %394 = vmatpush1.msra.mxu0 0.0
    %395 = vmatprep.subr.mxu0 0.0
    %396 = vmatpush1.msra.mxu0 0.0
    %397 = vmatprep.subr.mxu0 0.0
    %398 = vmatpush1.msra.mxu0 0.0
    %399 = vmatprep.subr.mxu0 0.0
    %400 = vmatpush1.msra.mxu0 0.0
    %401 = vmatprep.subr.mxu0 0.0
    %402 = vmatpush1.msra.mxu0 0.0
    %403 = vmatprep.subr.mxu0 0.0
    %404 = vmatpush1.msra.mxu0 0.0
    %405 = vmatprep.subr.mxu0 0.0
    %406 = vmatpush1.msra.mxu0 0.0
    %407 = vmatprep.subr.mxu0 0.0
    %408 = vmatpush1.msra.mxu0 0.0
    %409 = vmatprep.subr.mxu0 0.0
    %410 = vmatpush1.msra.mxu0 0.0
    %411 = vmatprep.subr.mxu0 0.0
    %412 = vmatpush1.msra.mxu0 0.0
    %413 = vmatprep.subr.mxu0 0.0
    %414 = vmatpush1.msra.mxu0 0.0
    %415 = vmatprep.subr.mxu0 0.0
    %416 = vmatpush1.msra.mxu0 0.0
    %417 = vmatprep.mubr.f32.mxu0 0.0
    %418 = vmatmul.mubr.f32.gmra.mrb[0].mxu0 %v351
    %v419 = vpop.f32.mrb[0].mxu0
    %v420 = vadd.f32 0.0, %v419
    %v421 = vpop.f32.mrb[0].mxu0
    %422 = vdwg.mxu0
    %v423 = vsub.f32 %v273, %v269
    %v424 = vmul.f32 %v423, 1.442695
    %v425 = vpow.pop %v424
    %v426 = vmul.f32 %v347, %v425
    %v427 = vsub.f32 %v273, %v270
    %v428 = vmul.f32 %v427, 1.442695
    %v429 = vpow.pop %v428
    %v430 = vmul.f32 %v420, %v429
    %v431 = vld [vmem:[#allocation4] sm:$0xff]
    %v432 = vsub.f32 %v267, %v269
    %v433 = vmul.f32 %v432, 1.442695
    %v434 = vpow.pop %v433
    %v435 = vmul.f32 %v431, %v434
    %v436 = vadd.f32 %v435, %v426
    %vm437 = vcmask 7168
    %438 = vst.msk [vmem:[#allocation4] sm:$0xff] %vm437, %v436
    %v439 = vld [vmem:[#allocation8] sm:$0x1]
    %v440 = vsub.f32 %v268, %v270
    %v441 = vmul.f32 %v440, 1.442695
    %v442 = vpow.pop %v441
    %v443 = vmul.f32 %v439, %v442
    %v444 = vadd.f32 %v443, %v430
    %vm445 = vcmask 57344
    %446 = vst.msk [vmem:[#allocation8] sm:$0x1] %vm445, %v444
    %447 = vst.msk [vmem:[#allocation3] sm:$0xff] %vm437, %v269
    %448 = vst.msk [vmem:[#allocation7] sm:$0x1] %vm445, %v270
    %p449 = scmp.eq.s32.totalorder 0, 0
    // Predicated region
    $region34: #{tpu_custom_call.1} parent=1 // pred_check
      %p450 = pneg %p449
    $region35: #{tpu_custom_call.1} parent=1 // pred_check_branch
      %452 = sbr.rel (%p450) target = $region37
    $region36: #{tpu_custom_call.1} parent=1 // pred_region
      %v453 = vlaneseq
      %v454 = vshrl.u32 %v453, 7
      %v455 = vlaneseq
      %v456 = vand.u32 %v455, 127
      %vm457 = vcmp.eq.s32.totalorder %v454, %v456
      %v458 = vsel %vm457, %v256, 0.0
      %v459 = vsel %vm257, %v458, 0.0
      %460 = vadd.xlane.f32.xlu0 %v459
      %v461 = vpop.xlane.xlu0 %460
      %462 = vst.msk [vmem:[#allocation5] sm:$0xff] %vm437, %v461
    $region37: #{tpu_custom_call.1} parent=1 // pred_fallthru
      _
    // Predicated region
    $region38: #{tpu_custom_call.1} parent=1 // pred_check
      %p463 = pneg %p44
    $region39: #{tpu_custom_call.1} parent=1 // pred_check_branch
      %465 = sbr.rel (%p463) target = $region41
    $region40: #{tpu_custom_call.1} parent=1 // pred_region
      %v466 = vld [vmem:[#allocation3] sm:$0xff]
      %v467 = vld [vmem:[#allocation4] sm:$0xff]
      %v468 = vlog2.pop %v467
      %v469 = vmul.f32 %v468, 0.6931472
      %v470 = vadd.f32 %v466, %v469
      %v471 = vld [vmem:[#allocation9] sm:$0x1]
      %v472 = vld [vmem:[#allocation5] sm:$0xff]
      %v473 = vmul.f32 %v472, 2.0
      %v474 = vsub.f32 %v470, %v473
      %v475 = vsel %vm437, %v474, 0.0
      %476 = vadd.xlane.f32.xlu0 %v475
      %v477 = vpop.xlane.xlu0 %476
      %v478 = vrot.slane %v477, 4
      %v479 = vadd.f32 %v477, %v478
      %v480 = vrot.slane %v479, 2
      %v481 = vadd.f32 %v479, %v480
      %v482 = vrot.slane %v481, 1
      %v483 = vadd.f32 %v481, %v482
      %s484 = vtos %v483
      %v485 = vstv %s484
      %v486 = vadd.f32 %v471, %v485
      %vm487 = vcmask 0
      %488 = vst.msk [vmem:[#allocation9] sm:$0x1] %vm487, %v486
      %v489 = vld [vmem:[#allocation10] sm:$0x1]
      %v490 = vld [vmem:[#allocation5] sm:$0xff]
      %v491 = vld [vmem:[#allocation3] sm:$0xff]
      %vm492 = vcmp.ge.f32.partialorder %v490, %v491
      %v493 = vsel %vm492, 1, 0
      %v494 = vcvt.s32.f32 %v493
      %v495 = vsel %vm437, %v494, 0.0
      %496 = vadd.xlane.f32.xlu0 %v495
      %v497 = vpop.xlane.xlu0 %496
      %v498 = vrot.slane %v497, 4
      %v499 = vadd.f32 %v497, %v498
      %v500 = vrot.slane %v499, 2
      %v501 = vadd.f32 %v499, %v500
      %v502 = vrot.slane %v501, 1
      %v503 = vadd.f32 %v501, %v502
      %s504 = vtos %v503
      %v505 = vstv %s504
      %v506 = vadd.f32 %v489, %v505
      %507 = vst.msk [vmem:[#allocation10] sm:$0x1] %vm487, %v506
    $region41: #{tpu_custom_call.1} parent=1 // pred_fallthru
      _
    // Predicated region
    $region42: #{tpu_custom_call.1} parent=1 // pred_check
      %p508 = pneg %p43
    $region43: #{tpu_custom_call.1} parent=1 // pred_check_branch
      %510 = sbr.rel (%p508) target = $region45
    $region44: #{tpu_custom_call.1} parent=1 // pred_region
      %v511 = vld [vmem:[#allocation7] sm:$0x1]
      %v512 = vld [vmem:[#allocation8] sm:$0x1]
      %v513 = vlog2.pop %v512
      %v514 = vmul.f32 %v513, 0.6931472
      %v515 = vadd.f32 %v511, %v514
      %v516 = vld [vmem:[#allocation9] sm:$0x1]
      %v517 = vsel %vm445, %v515, 0.0
      %518 = vadd.xlane.f32.xlu0 %v517
      %v519 = vpop.xlane.xlu0 %518
      %v520 = vrot.slane %v519, 4
      %v521 = vadd.f32 %v519, %v520
      %v522 = vrot.slane %v521, 2
      %v523 = vadd.f32 %v521, %v522
      %v524 = vrot.slane %v523, 1
      %v525 = vadd.f32 %v523, %v524
      %s526 = vtos %v525
      %v527 = vstv %s526
      %v528 = vadd.f32 %v516, %v527
      %vm529 = vcmask 0
      %530 = vst.msk [vmem:[#allocation9] sm:$0x1] %vm529, %v528
    $region45: #{tpu_custom_call.1} parent=1 // pred_fallthru
      _
    // Predicated region
    $region46: #{tpu_custom_call.1} parent=1 // pred_check
      _
    $region47: #{tpu_custom_call.1} parent=1 // pred_check_branch
      %532 = sbr.rel (%p45) target = $region49
    $region48: #{tpu_custom_call.1} parent=1 // pred_region
      %v533 = vld [vmem:[#allocation9] sm:$0x1]
      %v534 = vmul.f32 %v533, 0.0625
      %vm535 = vcmask 0
      %536 = vst.msk [vmem:[#allocation17] sm:$0x1] %vm535, %v534
      %v537 = vld [vmem:[#allocation10] sm:$0x1]
      %v538 = vmul.f32 %v537, 12.5
      %539 = vst.msk [vmem:[#allocation18] sm:$0x1] %vm535, %v538
    $region49: #{tpu_custom_call.1} parent=1 // pred_fallthru
      _
    // Predicated region
    $region50: #{tpu_custom_call.1} parent=1 // pred_check
      _
    $region51: #{tpu_custom_call.1} parent=1 // pred_check_branch
      %541 = sbr.rel (0) target = $region53
    $region52: #{tpu_custom_call.1} parent=1 // pred_region
      %s543 = ssub.s32 16, 16
      %544 = vsyncadd [#allocation14], %s543
      %s546 = sshll.u32 [#allocation17], 4
      %s547 = int_to_ptr.vmem [resolvable:$true] %s546
      %549 = dma.vmem_to_hbm [thread:$0]  %s547, 16, %s3, [#allocation14]
    $region53: #{tpu_custom_call.1} parent=1 // pred_fallthru
      _
    // Predicated region
    $region54: #{tpu_custom_call.1} parent=1 // pred_check
      _
    $region55: #{tpu_custom_call.1} parent=1 // pred_check_branch
      %551 = sbr.rel (0) target = $region57
    $region56: #{tpu_custom_call.1} parent=1 // pred_region
      %s553 = ssub.s32 16, 16
      %554 = vsyncadd [#allocation19], %s553
      %s556 = sshll.u32 [#allocation18], 4
      %s557 = int_to_ptr.vmem [resolvable:$true] %s556
      %559 = dma.vmem_to_hbm [thread:$0]  %s557, 16, %s4, [#allocation19]
    $region57: #{tpu_custom_call.1} parent=1 // pred_fallthru
      _
    // Predicated region
    $region58: #{tpu_custom_call.1} parent=1 // pred_check
      _
    $region59: #{tpu_custom_call.1} parent=1 // pred_check_branch
      %561 = sbr.rel (0) target = $region61
    $region60: #{tpu_custom_call.1} parent=1 // pred_region
      %562 = dma.done [#allocation14], 16
    $region61: #{tpu_custom_call.1} parent=1 // pred_fallthru
      _
    // Predicated region
    $region62: #{tpu_custom_call.1} parent=1 // pred_check
      _
    $region63: #{tpu_custom_call.1} parent=1 // pred_check_branch
      %564 = sbr.rel (0) target = $region65
    $region64: #{tpu_custom_call.1} parent=1 // pred_region
      %565 = dma.done [#allocation19], 16
    $region65: #{tpu_custom_call.1} parent=1 // pred_fallthru
      _
    %566 = vsyncpa [#allocation13], 1
    %567 = vsyncpa [#allocation16], 1
    %568 = vsyncpa [#allocation14], 1
    %569 = vsyncpa [#allocation19], 1

</llo_original>
